<compile_context>
chip_gen: v6e
topology: v6e:2x2x1
jax: 0.10.0
libtpu: 0.0.40
codegen_flags: <defaults>
</compile_context>

<pallas_src>
import functools

import jax
import jax.numpy as jnp
from jax import lax
from jax.experimental import pallas as pl
from jax.experimental.pallas import tpu as pltpu


def _cql_kernel(v_ref, l_ref, qt_ref, out_ref, qsum_ref, *,
                inv_t, n_aug, batch, pad_cols):
    qi = pl.program_id(0)
    n_qt = pl.num_programs(0)

    @pl.when(qi == 0)
    def _init():
        qsum_ref[...] = jnp.zeros_like(qsum_ref)

    v = v_ref[...]                                   # (A*B, F), native dtype
    v_s = v * jnp.asarray(inv_t, dtype=v.dtype)      # fold 1/T into the small operand

    # (A*B, F) @ (F, TQ) -> (A*B, TQ); contraction dim leads on the RHS (native
    # MXU orientation, no per-tile transpose), f32 accumulation.
    logits = lax.dot_general(
        v_s, qt_ref[...],
        dimension_numbers=(((1,), (0,)), ((), ())),
        preferred_element_type=jnp.float32,
    )
    # Padded queue columns are all-zero -> each contributes exactly exp(0) = 1
    # per row; that constant is removed at finalize (no per-tile mask here).
    qsum_ref[...] += jnp.sum(jnp.exp(logits), axis=-1, keepdims=True)   # (A*B, 1)

    @pl.when(qi == n_qt - 1)
    def _finalize():
        qsum = qsum_ref[...]                          # (A*B, 1)
        if pad_cols:
            qsum = qsum - jnp.float32(pad_cols)       # exact in f32
        v32 = v_s.astype(jnp.float32)                 # (A*B, F), already scaled by 1/T
        l32 = l_ref[...].astype(jnp.float32)          # (B, F)
        total = jnp.float32(0.0)
        for j in range(n_aug):                        # static, tiny; runs once per call
            sl = slice(j * batch, (j + 1) * batch)
            s_j = jnp.sum(v32[sl, :] * l32, axis=-1, keepdims=True)   # (B, 1) = S[j, :]
            bat_j = jnp.sum(jnp.exp(s_j))                             # scalar, same for all u
            denom_j = jnp.log(bat_j + qsum[sl, :])                    # (B, 1)
            total = total + jnp.sum(s_j - denom_j)
        out_ref[...] = jnp.broadcast_to((-total / batch).astype(jnp.float32), (1, 1))


def _vmem_capacity_bytes():
    try:
        info = pltpu.get_tpu_info()
        cap = getattr(info, "vmem_capacity_bytes", None)
        if cap:
            return int(cap)
    except Exception:
        pass
    return 64 << 20   # conservative fallback (v7x per-TC); v5e/v6e have 128 MiB


def _pick_queue_tile(feat, q_itemsize, m_rows, queue_tile):
    if queue_tile is None:
        vmem_cap = _vmem_capacity_bytes()
        # Budget ~1/4 of VMEM for the double-buffered queue tile plus the live
        # f32 logits/exp temporaries; cap 8K on 128 MiB parts, 4K on 64 MiB (v7x).
        budget = vmem_cap // 4
        per_col = 2 * feat * q_itemsize + 2 * m_rows * 4
        tq = budget // max(per_col, 1)
        tq = min(tq, 8192 if vmem_cap >= (96 << 20) else 4096)
        tq = max(tq, 256)
    else:
        tq = int(queue_tile)
    tq = max(128, (tq // 128) * 128)
    if tq >= 512:
        tq = (tq // 256) * 256        # align N to the 256-wide MXU on v6e/v7x
    return tq


def contrastive_queue_loss_pretransposed(V, L, queue_t, *, queue_size,
                                         temperature=0.1, queue_tile=None):
    """Core entry point.

    V:       (n_aug, batch, feat)
    L:       (batch, feat)
    queue_t: (feat, q_pad) feature-major queue; columns >= queue_size MUST be zero.
             Keep the training-loop queue stored in this layout to avoid a
             per-step transpose+pad HBM pass.
    """
    A, B, F = V.shape
    Fq, q_pad = queue_t.shape
    assert Fq == F and L.shape == (B, F) and q_pad >= queue_size
    M = A * B

    q_isz = jnp.dtype(queue_t.dtype).itemsize
    tq = _pick_queue_tile(F, q_isz, M, queue_tile)
    if q_pad <= tq:
        tq = q_pad                     # single full-extent tile
    else:
        t = tq
        while t >= 128 and q_pad % t:  # tq must evenly tile the padded queue
            t -= 128
        tq = t if t >= 128 else q_pad
    n_qt = q_pad // tq
    pad_cols = q_pad - queue_size

    # VMEM budget from actual tile bytes (inputs are double-buffered by the pipeline).
    in_isz = jnp.dtype(V.dtype).itemsize
    vmem_cap = _vmem_capacity_bytes()
    est = (2 * M * F * in_isz          # resident V_flat block
           + 2 * B * F * in_isz        # resident L block
           + 2 * F * tq * q_isz        # streamed queue tile (double-buffered)
           + 2 * M * tq * 4            # f32 logits + exp temporaries
           + M * 4 + 4096)             # qsum scratch + slack
    vmem_limit = int(min(max(int(1.3 * est), 16 << 20), int(0.85 * vmem_cap)))

    kernel = functools.partial(
        _cql_kernel,
        inv_t=1.0 / float(temperature),
        n_aug=int(A),
        batch=int(B),
        pad_cols=int(pad_cols),
    )

    V_flat = V.reshape(M, F)           # fuse augs into the MXU M dim (cheap reshape)

    out = pl.pallas_call(
        kernel,
        out_shape=jax.ShapeDtypeStruct((1, 1), jnp.float32),
        grid_spec=pltpu.PrefetchScalarGridSpec(
            num_scalar_prefetch=0,
            grid=(n_qt,),
            in_specs=[
                pl.BlockSpec((M, F), lambda qi: (0, 0)),    # V_flat: resident
                pl.BlockSpec((B, F), lambda qi: (0, 0)),    # L: resident
                pl.BlockSpec((F, tq), lambda qi: (0, qi)),  # queue: streamed once
                # (add pipeline_mode=pl.Buffered(3) here only if DMA is exposed)
            ],
            out_specs=pl.BlockSpec((1, 1), lambda qi: (0, 0)),
            scratch_shapes=[pltpu.VMEM((M, 1), jnp.float32)],   # online per-row qsum
        ),
        compiler_params=pltpu.CompilerParams(
            dimension_semantics=("arbitrary",),
            vmem_limit_bytes=vmem_limit,
        ),
    )(V_flat, L, queue_t)
    return out[0, 0]


def contrastive_queue_loss(V, L, queue, temperature=0.1, *, queue_tile=None):
    """Convenience wrapper taking the queue in its PyTorch (queue_size, feat) layout.

    Does one fused transpose(+pad) pass before the kernel; training loops should
    instead keep the queue stored as (feat, q_pad) and call
    contrastive_queue_loss_pretransposed directly.
    """
    A, B, F = V.shape
    Q, Fq = queue.shape
    assert Fq == F and L.shape == (B, F)

    tq = _pick_queue_tile(F, jnp.dtype(queue.dtype).itemsize, A * B, queue_tile)
    if Q <= tq:
        tq = Q
        q_pad = Q
    else:
        q_pad = pl.cdiv(Q, tq) * tq

    queue_t = jnp.swapaxes(queue, 0, 1)                    # (F, Q)
    if q_pad != Q:
        queue_t = jnp.pad(queue_t, ((0, 0), (0, q_pad - Q)))

    return contrastive_queue_loss_pretransposed(
        V, L, queue_t, queue_size=Q, temperature=temperature, queue_tile=tq)


def _reference_loss(V, L, queue, temperature=0.1):
    """Pure-JAX reference matching the PyTorch loops exactly (full-f32 matmuls)."""
    A, B, _ = V.shape
    s = jnp.einsum('abf,bf->ab', V, L, precision='highest') / temperature
    bat = jnp.sum(jnp.exp(s), axis=-1, keepdims=True)               # (A, 1)
    ql = jnp.einsum('abf,qf->abq', V, queue, precision='highest') / temperature
    qsum = jnp.sum(jnp.exp(ql), axis=-1)                            # (A, B)
    denom = jnp.log(bat + qsum)
    return -jnp.sum(s - denom) / B


if __name__ == "__main__":
    key = jax.random.PRNGKey(0)
    kv, kl, kq = jax.random.split(key, 3)

    # Small shapes; queue_size=300 with queue_tile=128 exercises the streamed
    # (3-tile) queue reduction AND the padded-tail (finalize subtraction) path.
    n_aug, batch, feat, queue_size = 2, 8, 128, 300
    temperature = 0.1

    def _unit(x):
        return x / jnp.linalg.norm(x, axis=-1, keepdims=True)

    V = _unit(jax.random.normal(kv, (n_aug, batch, feat), dtype=jnp.float32))
    L = _unit(jax.random.normal(kl, (batch, feat), dtype=jnp.float32))
    queue = _unit(jax.random.normal(kq, (queue_size, feat), dtype=jnp.float32))

    ref = _reference_loss(V, L, queue, temperature)

    # 1) streamed + padded queue path (3 tiles of 128, 84 zero-padded columns)
    loss_tiled = contrastive_queue_loss(V, L, queue, temperature, queue_tile=128)
    jax.block_until_ready(loss_tiled)
    assert jnp.allclose(loss_tiled, ref, rtol=1e-4, atol=1e-4), (loss_tiled, ref)

    # 2) auto tile size (single full-queue tile at this small queue size)
    loss_auto = contrastive_queue_loss(V, L, queue, temperature)
    jax.block_until_ready(loss_auto)
    assert jnp.allclose(loss_auto, ref, rtol=1e-4, atol=1e-4), (loss_auto, ref)

    # 3) persistent feature-major queue layout (what a training loop should keep)
    q_pad = 384
    queue_t = jnp.pad(jnp.swapaxes(queue, 0, 1), ((0, 0), (0, q_pad - queue_size)))
    loss_qt = contrastive_queue_loss_pretransposed(
        V, L, queue_t, queue_size=queue_size, temperature=temperature, queue_tile=128)
    jax.block_until_ready(loss_qt)
    assert jnp.allclose(loss_qt, ref, rtol=1e-4, atol=1e-4), (loss_qt, ref)

    print("KERNEL_OK")
</pallas_src>

<mosaic_0001>
module attributes {stable_mosaic.version = 11 : i64} {
  func.func @_cql_kernel(%arg0: i32, %arg1: memref<16x128xf32, #tpu.memory_space<vmem>>, %arg2: memref<8x128xf32, #tpu.memory_space<vmem>>, %arg3: memref<128x128xf32, #tpu.memory_space<vmem>>, %arg4: memref<1x1xf32, #tpu.memory_space<vmem>>, %arg5: memref<16x1xf32, #tpu.memory_space<vmem>>) attributes {dimension_semantics = [#tpu.dimension_semantics<arbitrary>], iteration_bounds = array<i64: 3>, scalar_prefetch = 0 : i64, scratch_operands = 1 : i64, tpu.core_type = #tpu.core_type<tc>, window_params = [{pipeline_mode = #tpu.pipeline_mode<synchronous>, transform_indices = @transform_0, window_bounds = array<i64: 16, 128>}, {pipeline_mode = #tpu.pipeline_mode<synchronous>, transform_indices = @transform_1, window_bounds = array<i64: 8, 128>}, {transform_indices = @transform_2, window_bounds = array<i64: 128, 128>}, {pipeline_mode = #tpu.pipeline_mode<synchronous>, transform_indices = @transform_3, window_bounds = array<i64: 1, 1>}]} {
    %c0_i32 = arith.constant 0 : i32
    %0 = arith.cmpi eq, %arg0, %c0_i32 : i32
    %1 = arith.extui %0 : i1 to i32
    %c0_i32_0 = arith.constant 0 : i32
    %2 = arith.cmpi ne, %1, %c0_i32_0 : i32
    scf.if %2 {
      %cst_11 = arith.constant 0.000000e+00 : f32
      %17 = vector.broadcast %cst_11 : f32 to vector<16x1xf32>
      %c0_12 = arith.constant 0 : index
      %c0_13 = arith.constant 0 : index
      %18 = vector.load %arg5[%c0_12, %c0_13] : memref<16x1xf32, #tpu.memory_space<vmem>>, vector<16x1xf32>
      tpu.vector_store %arg5[%c0_12, %c0_13], %17 {strides = array<i32>} : memref<16x1xf32, #tpu.memory_space<vmem>>, vector<16x1xf32>,
    } else {
    }
    %c0 = arith.constant 0 : index
    %c0_1 = arith.constant 0 : index
    %3 = vector.load %arg1[%c0, %c0_1] : memref<16x128xf32, #tpu.memory_space<vmem>>, vector<16x128xf32>
    %cst = arith.constant 1.000000e+01 : f32
    %4 = vector.broadcast %cst : f32 to vector<16x128xf32>
    %5 = arith.mulf %3, %4 : vector<16x128xf32>
    %c0_2 = arith.constant 0 : index
    %c0_3 = arith.constant 0 : index
    %6 = vector.load %arg3[%c0_2, %c0_3] : memref<128x128xf32, #tpu.memory_space<vmem>>, vector<128x128xf32>
    %cst_4 = arith.constant dense<0.000000e+00> : vector<16x128xf32>
    %7 = tpu.matmul %5, %6, %cst_4 {dimension_numbers = #tpu.dot_dimension_numbers<[1], [0], [0], [1], [0, 0, 1, 1], [], []>} : vector<16x128xf32>, vector<128x128xf32>, vector<16x128xf32> -> vector<16x128xf32>
    %c0_5 = arith.constant 0 : index
    %c0_6 = arith.constant 0 : index
    %8 = vector.load %arg5[%c0_5, %c0_6] : memref<16x1xf32, #tpu.memory_space<vmem>>, vector<16x1xf32>
    %9 = math.exp %7 : vector<16x128xf32>
    %cst_7 = arith.constant dense<0.000000e+00> : vector<16xf32>
    %10 = vector.multi_reduction <add>, %9, %cst_7 [1] : vector<16x128xf32> to vector<16xf32>
    %11 = vector.shape_cast %10 : vector<16xf32> to vector<16x1xf32>
    %12 = arith.addf %8, %11 : vector<16x1xf32>
    %c0_8 = arith.constant 0 : index
    %c0_9 = arith.constant 0 : index
    %13 = vector.load %arg5[%c0_8, %c0_9] : memref<16x1xf32, #tpu.memory_space<vmem>>, vector<16x1xf32>
    tpu.vector_store %arg5[%c0_8, %c0_9], %12 {strides = array<i32>} : memref<16x1xf32, #tpu.memory_space<vmem>>, vector<16x1xf32>,
    %c2_i32 = arith.constant 2 : i32
    %14 = arith.cmpi eq, %arg0, %c2_i32 : i32
    %15 = arith.extui %14 : i1 to i32
    %c0_i32_10 = arith.constant 0 : i32
    %16 = arith.cmpi ne, %15, %c0_i32_10 : i32
    scf.if %16 {
      %c0_11 = arith.constant 0 : index
      %c0_12 = arith.constant 0 : index
      %17 = vector.load %arg5[%c0_11, %c0_12] : memref<16x1xf32, #tpu.memory_space<vmem>>, vector<16x1xf32>
      %cst_13 = arith.constant 8.400000e+01 : f32
      %18 = vector.broadcast %cst_13 : f32 to vector<16x1xf32>
      %19 = arith.subf %17, %18 : vector<16x1xf32>
      %c0_14 = arith.constant 0 : index
      %c0_15 = arith.constant 0 : index
      %20 = vector.load %arg2[%c0_14, %c0_15] : memref<8x128xf32, #tpu.memory_space<vmem>>, vector<8x128xf32>
      %21 = vector.extract_strided_slice %5 {offsets = [0, 0], sizes = [8, 128], strides = [1, 1]} : vector<16x128xf32> to vector<8x128xf32>
      %22 = arith.mulf %21, %20 : vector<8x128xf32>
      %cst_16 = arith.constant dense<0.000000e+00> : vector<8xf32>
      %23 = vector.multi_reduction <add>, %22, %cst_16 [1] : vector<8x128xf32> to vector<8xf32>
      %24 = vector.shape_cast %23 : vector<8xf32> to vector<8x1xf32>
      %25 = math.exp %24 : vector<8x1xf32>
      %26 = vector.shape_cast %25 : vector<8x1xf32> to vector<1x8x1xf32>
      %cst_17 = arith.constant dense<0.000000e+00> : vector<1xf32>
      %27 = vector.multi_reduction <add>, %26, %cst_17 [1, 2] : vector<1x8x1xf32> to vector<1xf32>
      %28 = vector.shape_cast %27 : vector<1xf32> to vector<1x1x1xf32>
      %29 = vector.extract %28[0, 0, 0] : f32 from vector<1x1x1xf32>
      %30 = vector.extract_strided_slice %19 {offsets = [0, 0], sizes = [8, 1], strides = [1, 1]} : vector<16x1xf32> to vector<8x1xf32>
      %31 = vector.broadcast %29 : f32 to vector<8x1xf32>
      %32 = arith.addf %31, %30 : vector<8x1xf32>
      %33 = math.log %32 : vector<8x1xf32>
      %34 = arith.subf %24, %33 : vector<8x1xf32>
      %35 = vector.shape_cast %34 : vector<8x1xf32> to vector<1x8x1xf32>
      %cst_18 = arith.constant dense<0.000000e+00> : vector<1xf32>
      %36 = vector.multi_reduction <add>, %35, %cst_18 [1, 2] : vector<1x8x1xf32> to vector<1xf32>
      %37 = vector.shape_cast %36 : vector<1xf32> to vector<1x1x1xf32>
      %38 = vector.extract %37[0, 0, 0] : f32 from vector<1x1x1xf32>
      %cst_19 = arith.constant 0.000000e+00 : f32
      %39 = arith.addf %cst_19, %38 : f32
      %40 = vector.extract_strided_slice %5 {offsets = [8, 0], sizes = [8, 128], strides = [1, 1]} : vector<16x128xf32> to vector<8x128xf32>
      %41 = arith.mulf %40, %20 : vector<8x128xf32>
      %cst_20 = arith.constant dense<0.000000e+00> : vector<8xf32>
      %42 = vector.multi_reduction <add>, %41, %cst_20 [1] : vector<8x128xf32> to vector<8xf32>
      %43 = vector.shape_cast %42 : vector<8xf32> to vector<8x1xf32>
      %44 = math.exp %43 : vector<8x1xf32>
      %45 = vector.shape_cast %44 : vector<8x1xf32> to vector<1x8x1xf32>
      %cst_21 = arith.constant dense<0.000000e+00> : vector<1xf32>
      %46 = vector.multi_reduction <add>, %45, %cst_21 [1, 2] : vector<1x8x1xf32> to vector<1xf32>
      %47 = vector.shape_cast %46 : vector<1xf32> to vector<1x1x1xf32>
      %48 = vector.extract %47[0, 0, 0] : f32 from vector<1x1x1xf32>
      %49 = vector.extract_strided_slice %19 {offsets = [8, 0], sizes = [8, 1], strides = [1, 1]} : vector<16x1xf32> to vector<8x1xf32>
      %50 = vector.broadcast %48 : f32 to vector<8x1xf32>
      %51 = arith.addf %50, %49 : vector<8x1xf32>
      %52 = math.log %51 : vector<8x1xf32>
      %53 = arith.subf %43, %52 : vector<8x1xf32>
      %54 = vector.shape_cast %53 : vector<8x1xf32> to vector<1x8x1xf32>
      %cst_22 = arith.constant dense<0.000000e+00> : vector<1xf32>
      %55 = vector.multi_reduction <add>, %54, %cst_22 [1, 2] : vector<1x8x1xf32> to vector<1xf32>
      %56 = vector.shape_cast %55 : vector<1xf32> to vector<1x1x1xf32>
      %57 = vector.extract %56[0, 0, 0] : f32 from vector<1x1x1xf32>
      %58 = arith.addf %39, %57 : f32
      %cst_23 = arith.constant 0.000000e+00 : f32
      %59 = arith.subf %cst_23, %58 : f32
      %cst_24 = arith.constant 8.000000e+00 : f32
      %60 = arith.divf %59, %cst_24 : f32
      %61 = vector.broadcast %60 : f32 to vector<1x1xf32>
      %c0_25 = arith.constant 0 : index
      %c0_26 = arith.constant 0 : index
      %62 = vector.load %arg4[%c0_25, %c0_26] : memref<1x1xf32, #tpu.memory_space<vmem>>, vector<1x1xf32>
      tpu.vector_store %arg4[%c0_25, %c0_26], %61 {strides = array<i32>} : memref<1x1xf32, #tpu.memory_space<vmem>>, vector<1x1xf32>,
    } else {
    }
    return
  }
  func.func @transform_0(%arg0: i32) -> (i32, i32) {
    %c0_i32 = arith.constant 0 : i32
    %c0_i32_0 = arith.constant 0 : i32
    %c0_i32_1 = arith.constant 0 : i32
    return %c0_i32, %c0_i32_0 : i32, i32
  }
  func.func @transform_1(%arg0: i32) -> (i32, i32) {
    %c0_i32 = arith.constant 0 : i32
    %c0_i32_0 = arith.constant 0 : i32
    %c0_i32_1 = arith.constant 0 : i32
    return %c0_i32, %c0_i32_0 : i32, i32
  }
  func.func @transform_2(%arg0: i32) -> (i32, i32) {
    %c0_i32 = arith.constant 0 : i32
    %c0_i32_0 = arith.constant 0 : i32
    return %c0_i32, %arg0 : i32, i32
  }
  func.func @transform_3(%arg0: i32) -> (i32, i32) {
    %c0_i32 = arith.constant 0 : i32
    %c0_i32_0 = arith.constant 0 : i32
    %c0_i32_1 = arith.constant 0 : i32
    return %c0_i32, %c0_i32_0 : i32, i32
  }
}

</mosaic_0001>

<llo_original>
// kernel: tpu_custom_call.1
$region0: #{tpu_custom_call.1}
  #allocation0 [shape = 'u32[]', space=smem, size = 0x4, offset = 0x4, fixed_abs, tag = 'smem constant byte address 0x4 - core index']
  #allocation1 [shape = 'u32[144,128]{1,0:T(1,128)}', space=vmem, size = 0x12000, scoped, tag = 'internal scratch']
  #allocation2 [shape = 'f32[16,1]{1,0:T(8,128)}', space=vmem, size = 0x2000, scoped, tag = 'scratch operand']
  %s0 = inlined_call_operand.hbm [shape: f32[16,128], index: 0, kind: input, shape index: {}]
  %s1 = inlined_call_operand.hbm [shape: f32[8,128], index: 1, kind: input, shape index: {}]
  %s2 = inlined_call_operand.hbm [shape: f32[128,384], index: 2, kind: input, shape index: {}]
  %s3 = inlined_call_operand.hbm [shape: f32[1,1], index: 3, kind: output, shape index: {}]
  %s4 = sld [smem:[#allocation0]]
  $region65: #{tpu_custom_call.1} parent=0
    _
  %s6 = ssub.s32 1, %s4
  %s7 = scalar_select 0, %s6, %s4
  $region1: #{tpu_custom_call.1} parent=0
    #allocation3 [shape = 'u8[8192]{0}', space=vmem, size = 0x2000, scoped, tag = 'input window, operand 0, single buffered']
    #allocation4 [shape = 's32[2]{0}', space=sflag, size = 0x8, scoped, tag = 'scoped memory for tpu_custom_call.1']
    #allocation5 [shape = 's32[2]{0}', space=sflag, size = 0x8, scoped, tag = 'scoped memory for tpu_custom_call.1']
    #allocation6 [shape = 'u8[4096]{0}', space=vmem, size = 0x1000, scoped, tag = 'input window, operand 1, single buffered']
    #allocation7 [shape = 's32[1]{0}', space=sflag, size = 0x4, scoped, tag = 'scoped memory for tpu_custom_call.1']
    #allocation8 [shape = 'u8[131072]{0}', space=vmem, size = 0x20000, scoped, tag = 'input window, operand 2']
    #allocation9 [shape = 'u8[512]{0}', space=vmem, size = 0x400, scoped, tag = 'output window, operand 0, single buffered']
    %8 = vsyncpa [#allocation4], 0
    %9 = vsyncpa [#allocation7], 0
    %10 = vsyncpa [#allocation5], 0
    loop: start=0, step=1, limit=5
    $region2: #{tpu_custom_call.1} parent=1 // loop_pre_header
      _
    $region3: #{tpu_custom_call.1} parent=1 // loop_header
      %s12 = sphi 0, %s16
      %p13 = scmp.ge.s32.totalorder %s12, 5
      %s20 = sphi 0, %s20
      %s22 = sphi 0, %s20
      %s23 = sphi 0, %s22
      %s37 = sphi 0, %s23
      %s41 = sphi 0, %s41
      %s43 = sphi 0, %s41
      %s44 = sphi 0, %s43
      %s58 = sphi 0, %s44
      %s64 = sphi 0, %s66
      %s67 = sphi 0, %s64
      %s68 = sphi 0, %s67
      %s84 = sphi 0, %s68
      %s88 = sphi 0, %s88
      %s90 = sphi 0, %s88
      %s91 = sphi 0, %s90
      %s105 = sphi 0, %s91
    $region4: #{tpu_custom_call.1} parent=1 // loop_header_branch
      %15 = sbr.rel (%p13) target = $region8
    $region5: #{tpu_custom_call.1} parent=1 // loop_body
      %s17 = ssub.s32 %s12, 1
      %s18 = ssub.s32 %s12, 2
      %s19 = sadd.s32 %s12, 1
      %s21 = sadd.s32 %s20, 1
      %p24 = scmp.eq.s32.totalorder %s12, 2
      %p25 = scmp.ne.s32.totalorder %s20, %s22
      %p26 = scmp.eq.s32.totalorder %s12, 0
      %p27 = por %p25, %p26
      %p28 = scmp.ne.s32.totalorder %s20, %s22
      %p29 = scmp.eq.s32.totalorder %s17, 2
      %p30 = por %p28, %p29
      %p31 = scmp.ne.s32.totalorder %s22, %s23
      %p32 = scmp.eq.s32.totalorder %s17, 0
      %p33 = por %p31, %p32
      %p34 = scmp.ne.s32.totalorder %s22, %s23
      %p35 = scmp.eq.s32.totalorder %s18, 2
      %p36 = por %p34, %p35
      %p38 = scmp.ne.s32.totalorder %s23, %s37
      %p39 = scmp.eq.s32.totalorder %s18, 0
      %p40 = por %p38, %p39
      %s42 = sadd.s32 %s41, 1
      %p45 = scmp.eq.s32.totalorder %s12, 2
      %p46 = scmp.ne.s32.totalorder %s41, %s43
      %p47 = scmp.eq.s32.totalorder %s12, 0
      %p48 = por %p46, %p47
      %p49 = scmp.ne.s32.totalorder %s41, %s43
      %p50 = scmp.eq.s32.totalorder %s17, 2
      %p51 = por %p49, %p50
      %p52 = scmp.ne.s32.totalorder %s43, %s44
      %p53 = scmp.eq.s32.totalorder %s17, 0
      %p54 = por %p52, %p53
      %p55 = scmp.ne.s32.totalorder %s43, %s44
      %p56 = scmp.eq.s32.totalorder %s18, 2
      %p57 = por %p55, %p56
      %p59 = scmp.ne.s32.totalorder %s44, %s58
      %p60 = scmp.eq.s32.totalorder %s18, 0
      %p61 = por %p59, %p60
      %s62 = ssub.s32 %s12, %s19
      %p63 = scmp.eq.s32.totalorder %s62, 0
      %s65 = sadd.s32 %s64, 1
      %s66 = scalar_select %p63, %s64, %s65
      %p69 = pneg %p63
      %p70 = scmp.eq.s32.totalorder %s12, 2
      %p71 = por %p69, %p70
      %p72 = scmp.ne.s32.totalorder %s64, %s67
      %p73 = scmp.eq.s32.totalorder %s12, 0
      %p74 = por %p72, %p73
      %p75 = scmp.ne.s32.totalorder %s64, %s67
      %p76 = scmp.eq.s32.totalorder %s17, 2
      %p77 = por %p75, %p76
      %p78 = scmp.ne.s32.totalorder %s67, %s68
      %p79 = scmp.eq.s32.totalorder %s17, 0
      %p80 = por %p78, %p79
      %p81 = scmp.ne.s32.totalorder %s67, %s68
      %p82 = scmp.eq.s32.totalorder %s18, 2
      %p83 = por %p81, %p82
      %p85 = scmp.ne.s32.totalorder %s68, %s84
      %p86 = scmp.eq.s32.totalorder %s18, 0
      %p87 = por %p85, %p86
      %s89 = sadd.s32 %s88, 1
      %p92 = scmp.eq.s32.totalorder %s12, 2
      %p93 = scmp.ne.s32.totalorder %s88, %s90
      %p94 = scmp.eq.s32.totalorder %s12, 0
      %p95 = por %p93, %p94
      %p96 = scmp.ne.s32.totalorder %s88, %s90
      %p97 = scmp.eq.s32.totalorder %s17, 2
      %p98 = por %p96, %p97
      %p99 = scmp.ne.s32.totalorder %s90, %s91
      %p100 = scmp.eq.s32.totalorder %s17, 0
      %p101 = por %p99, %p100
      %p102 = scmp.ne.s32.totalorder %s90, %s91
      %p103 = scmp.eq.s32.totalorder %s18, 2
      %p104 = por %p102, %p103
      %p106 = scmp.ne.s32.totalorder %s91, %s105
      %p107 = scmp.eq.s32.totalorder %s18, 0
      %p108 = por %p106, %p107
      %p109 = scmp.le.s32.totalorder 1, %s12
      %p110 = scmp.lt.s32.totalorder %s12, 4
      %p111 = pnand %p109, %p110
      %p112 = pneg %p111
      // Predicated region
      $region9: #{tpu_custom_call.1} parent=5 // pred_check
        _
      $region10: #{tpu_custom_call.1} parent=5 // pred_check_branch
        %114 = sbr.rel (%p111) target = $region12
      $region11: #{tpu_custom_call.1} parent=5 // pred_region
        %s115 = ssub.s32 %s12, 1
        // Predicated region
        $region13: #{tpu_custom_call.1} parent=11 // pred_check
          %p116 = pneg %p33
        $region14: #{tpu_custom_call.1} parent=11 // pred_check_branch
          %118 = sbr.rel (%p116) target = $region16
        $region15: #{tpu_custom_call.1} parent=11 // pred_region
          %s120 = ssub.s32 256, 256
          %121 = vsyncadd [#allocation4], %s120
          %s122 = sshll.u32 [#allocation3], 4
          %s123 = int_to_ptr.vmem [resolvable:$true] %s122
          %128 = dma.hbm_to_vmem [thread:$0]  %s0, 256, %s123, [#allocation4], 128, 128, 8
        $region16: #{tpu_custom_call.1} parent=11 // pred_fallthru
          _
        // Predicated region
        $region17: #{tpu_custom_call.1} parent=11 // pred_check
          %p129 = pneg %p54
        $region18: #{tpu_custom_call.1} parent=11 // pred_check_branch
          %131 = sbr.rel (%p129) target = $region20
        $region19: #{tpu_custom_call.1} parent=11 // pred_region
          %s133 = ssub.s32 128, 128
          %134 = vsyncadd [#allocation7], %s133
          %s136 = sshll.u32 [#allocation6], 4
          %s137 = int_to_ptr.vmem [resolvable:$true] %s136
          %139 = dma.hbm_to_vmem [thread:$0]  %s1, 128, %s137, [#allocation7]
        $region20: #{tpu_custom_call.1} parent=11 // pred_fallthru
          _
      $region12: #{tpu_custom_call.1} parent=5 // pred_fallthru
        _
      %p140 = scmp.lt.s32.totalorder %s12, 3
      // Predicated region
      $region21: #{tpu_custom_call.1} parent=5 // pred_check
        %p141 = pneg %p140
      $region22: #{tpu_custom_call.1} parent=5 // pred_check_branch
        %143 = sbr.rel (%p141) target = $region24
      $region23: #{tpu_custom_call.1} parent=5 // pred_region
        // Predicated region
        $region25: #{tpu_custom_call.1} parent=23 // pred_check
          %p144 = pneg %p74
        $region26: #{tpu_custom_call.1} parent=23 // pred_check_branch
          %146 = sbr.rel (%p144) target = $region28
        $region27: #{tpu_custom_call.1} parent=23 // pred_region
          %s147 = sand.u32 %s12, 1
          %s148 = scalar_lea.sflag [#allocation4], %s147
          %s149 = sand.u32 %s64, 1
          %s150 = smul.addr %s149, 128
          %s151 = scalar_lea.vmem [#allocation8], %s150
          %s153 = ssub.s32 2048, 2048
          %154 = vsyncadd %s148, %s153
          %s155 = smul.addr %s12, 128
          %s156 = scalar_lea.hbm %s2, %s155
          %s157 = sshll.u32 %s151, 4
          %s158 = int_to_ptr.vmem [resolvable:$true] %s157
          %163 = dma.hbm_to_vmem [thread:$0]  %s156, 2048, %s158, %s148, 384, 128, 8
        $region28: #{tpu_custom_call.1} parent=23 // pred_fallthru
          _
      $region24: #{tpu_custom_call.1} parent=5 // pred_fallthru
        _
      %p164 = scmp.le.s32.totalorder 1, %s12
      %p165 = scmp.lt.s32.totalorder %s12, 4
      %p166 = pnand %p164, %p165
      %p167 = pneg %p166
      // Predicated region
      $region29: #{tpu_custom_call.1} parent=5 // pred_check
        _
      $region30: #{tpu_custom_call.1} parent=5 // pred_check_branch
        %169 = sbr.rel (%p166) target = $region32
      $region31: #{tpu_custom_call.1} parent=5 // pred_region
        %s170 = ssub.s32 %s12, 1
        // Predicated region
        $region33: #{tpu_custom_call.1} parent=31 // pred_check
          %p171 = pneg %p33
        $region34: #{tpu_custom_call.1} parent=31 // pred_check_branch
          %173 = sbr.rel (%p171) target = $region36
        $region35: #{tpu_custom_call.1} parent=31 // pred_region
          %174 = dma.done [#allocation4], 256
        $region36: #{tpu_custom_call.1} parent=31 // pred_fallthru
          _
        // Predicated region
        $region37: #{tpu_custom_call.1} parent=31 // pred_check
          %p175 = pneg %p54
        $region38: #{tpu_custom_call.1} parent=31 // pred_check_branch
          %177 = sbr.rel (%p175) target = $region40
        $region39: #{tpu_custom_call.1} parent=31 // pred_region
          %178 = dma.done [#allocation7], 128
        $region40: #{tpu_custom_call.1} parent=31 // pred_fallthru
          _
        %s179 = sand.u32 %s17, 1
        %s180 = scalar_lea.sflag [#allocation4], %s179
        %s181 = sand.u32 %s67, 1
        %s182 = smul.addr %s181, 128
        %s183 = scalar_lea.vmem [#allocation8], %s182
        // Predicated region
        $region41: #{tpu_custom_call.1} parent=31 // pred_check
          %p184 = pneg %p80
        $region42: #{tpu_custom_call.1} parent=31 // pred_check_branch
          %186 = sbr.rel (%p184) target = $region44
        $region43: #{tpu_custom_call.1} parent=31 // pred_region
          %187 = dma.done %s180, 2048
        $region44: #{tpu_custom_call.1} parent=31 // pred_fallthru
          _
        %p188 = pneg %p33
        %p189 = pneg %p30
        %p190 = pneg %p54
        %p191 = pneg %p51
        %s192 = sand.u32 %s17, 1
        %s193 = scalar_lea.sflag [#allocation4], %s192
        %s194 = sand.u32 %s67, 1
        %s195 = smul.addr %s194, 128
        %s196 = scalar_lea.vmem [#allocation8], %s195
        %p197 = pneg %p80
        %p198 = pneg %p77
        %p199 = pneg %p101
        %p200 = pneg %p98
        %p201 = scmp.eq.s32.totalorder %s17, 0
        // Predicated region
        $region45: #{tpu_custom_call.1} parent=31 // pred_check
          %p202 = pneg %p201
        $region46: #{tpu_custom_call.1} parent=31 // pred_check_branch
          %204 = sbr.rel (%p202) target = $region48
        $region47: #{tpu_custom_call.1} parent=31 // pred_region
          %vm205 = vcmask 7168
          %206 = vst.msk [vmem:[#allocation2] sm:$0xff] %vm205, 0.0
          %207 = vst.msk [vmem:[#allocation2 + $0x8] sm:$0xff] %vm205, 0.0
        $region48: #{tpu_custom_call.1} parent=31 // pred_fallthru
          _
        %v208 = vld [vmem:[#allocation3] sm:$0xff]
        %v209 = vld [vmem:[#allocation3 + $0x8] sm:$0xff]
        %v210 = vmul.f32 %v208, 10.0
        %v211 = vmul.f32 %v209, 10.0
        %v212 = vld [vmem:[%s183] sm:$0xff]
        %v213 = vld [vmem:[%s183 + $0x8] sm:$0xff]
        %v214 = vld [vmem:[%s183 + $0x10] sm:$0xff]
        %v215 = vld [vmem:[%s183 + $0x18] sm:$0xff]
        %v216 = vld [vmem:[%s183 + $0x20] sm:$0xff]
        %v217 = vld [vmem:[%s183 + $0x28] sm:$0xff]
        %v218 = vld [vmem:[%s183 + $0x30] sm:$0xff]
        %v219 = vld [vmem:[%s183 + $0x38] sm:$0xff]
        %v220 = vld [vmem:[%s183 + $0x40] sm:$0xff]
        %v221 = vld [vmem:[%s183 + $0x48] sm:$0xff]
        %v222 = vld [vmem:[%s183 + $0x50] sm:$0xff]
        %v223 = vld [vmem:[%s183 + $0x58] sm:$0xff]
        %v224 = vld [vmem:[%s183 + $0x60] sm:$0xff]
        %v225 = vld [vmem:[%s183 + $0x68] sm:$0xff]
        %v226 = vld [vmem:[%s183 + $0x70] sm:$0xff]
        %v227 = vld [vmem:[%s183 + $0x78] sm:$0xff]
        %228 = vmatprep.subr.mxu0 0.0
        %229 = vmatpush1.msra.mxu0 %v227
        %230 = vmatprep.subr.mxu0 0.0
        %231 = vmatpush1.msra.mxu0 %v226
        %232 = vmatprep.subr.mxu0 0.0
        %233 = vmatpush1.msra.mxu0 %v225
        %234 = vmatprep.subr.mxu0 0.0
        %235 = vmatpush1.msra.mxu0 %v224
        %236 = vmatprep.subr.mxu0 0.0
        %237 = vmatpush1.msra.mxu0 %v223
        %238 = vmatprep.subr.mxu0 0.0
        %239 = vmatpush1.msra.mxu0 %v222
        %240 = vmatprep.subr.mxu0 0.0
        %241 = vmatpush1.msra.mxu0 %v221
        %242 = vmatprep.subr.mxu0 0.0
        %243 = vmatpush1.msra.mxu0 %v220
        %244 = vmatprep.subr.mxu0 0.0
        %245 = vmatpush1.msra.mxu0 %v219
        %246 = vmatprep.subr.mxu0 0.0
        %247 = vmatpush1.msra.mxu0 %v218
        %248 = vmatprep.subr.mxu0 0.0
        %249 = vmatpush1.msra.mxu0 %v217
        %250 = vmatprep.subr.mxu0 0.0
        %251 = vmatpush1.msra.mxu0 %v216
        %252 = vmatprep.subr.mxu0 0.0
        %253 = vmatpush1.msra.mxu0 %v215
        %254 = vmatprep.subr.mxu0 0.0
        %255 = vmatpush1.msra.mxu0 %v214
        %256 = vmatprep.subr.mxu0 0.0
        %257 = vmatpush1.msra.mxu0 %v213
        %258 = vmatprep.subr.mxu0 0.0
        %259 = vmatpush1.msra.mxu0 %v212
        %260 = vmatprep.subr.mxu0 0.0
        %261 = vmatpush2.msra.mxu0 0.0
        %262 = vmatprep.subr.mxu0 0.0
        %263 = vmatpush2.msra.mxu0 0.0
        %264 = vmatprep.subr.mxu0 0.0
        %265 = vmatpush2.msra.mxu0 0.0
        %266 = vmatprep.subr.mxu0 0.0
        %267 = vmatpush2.msra.mxu0 0.0
        %268 = vmatprep.subr.mxu0 0.0
        %269 = vmatpush2.msra.mxu0 0.0
        %270 = vmatprep.subr.mxu0 0.0
        %271 = vmatpush2.msra.mxu0 0.0
        %272 = vmatprep.subr.mxu0 0.0
        %273 = vmatpush2.msra.mxu0 0.0
        %274 = vmatprep.subr.mxu0 0.0
        %275 = vmatpush2.msra.mxu0 0.0
        %276 = vmatprep.subr.mxu0 0.0
        %277 = vmatpush2.msra.mxu0 0.0
        %278 = vmatprep.subr.mxu0 0.0
        %279 = vmatpush2.msra.mxu0 0.0
        %280 = vmatprep.subr.mxu0 0.0
        %281 = vmatpush2.msra.mxu0 0.0
        %282 = vmatprep.subr.mxu0 0.0
        %283 = vmatpush2.msra.mxu0 0.0
        %284 = vmatprep.subr.mxu0 0.0
        %285 = vmatpush2.msra.mxu0 0.0
        %286 = vmatprep.subr.mxu0 0.0
        %287 = vmatpush2.msra.mxu0 0.0
        %288 = vmatprep.subr.mxu0 0.0
        %289 = vmatpush2.msra.mxu0 0.0
        %290 = vmatprep.subr.mxu0 0.0
        %291 = vmatpush2.msra.mxu0 0.0
        %292 = vmatprep.mubr.f32.mxu0 0.0
        %293 = vmatmul.mubr.f32.gmra.mxu0 %v210
        %v294 = vpop.f32.mrf.mxu0
        %v295 = vadd.f32 0.0, %v294
        %v296 = vpop.f32.mrf.mxu0
        %297 = vmatprep.mubr.f32.mxu0 0.0
        %298 = vmatmul.mubr.f32.gmra.mxu0 %v211
        %v299 = vpop.f32.mrf.mxu0
        %v300 = vadd.f32 0.0, %v299
        %v301 = vpop.f32.mrf.mxu0
        %302 = vdwg.mxu0
        %v303 = vld [vmem:[#allocation2] sm:$0xff]
        %v304 = vld [vmem:[#allocation2 + $0x8] sm:$0xff]
        %v305 = vmul.f32 %v295, 1.442695
        %v306 = vpow.pop %v305
        %v307 = vmul.f32 %v300, 1.442695
        %v308 = vpow.pop %v307
        %309 = vadd.xlane.f32.xlu0 %v306
        %v310 = vpop.xlane.xlu0 %309
        %311 = vadd.xlane.f32.xlu0 %v308
        %v312 = vpop.xlane.xlu0 %311
        %v313 = vadd.f32 %v303, %v310
        %v314 = vadd.f32 %v304, %v312
        %vm315 = vcmask 7168
        %316 = vst.msk [vmem:[#allocation2] sm:$0xff] %vm315, %v313
        %317 = vst.msk [vmem:[#allocation2 + $0x8] sm:$0xff] %vm315, %v314
        %p318 = scmp.eq.s32.totalorder %s17, 2
        // Predicated region
        $region49: #{tpu_custom_call.1} parent=31 // pred_check
          %p319 = pneg %p318
        $region50: #{tpu_custom_call.1} parent=31 // pred_check_branch
          %321 = sbr.rel (%p319) target = $region52
        $region51: #{tpu_custom_call.1} parent=31 // pred_region
          %v322 = vld [vmem:[#allocation2] sm:$0xff]
          %v323 = vld [vmem:[#allocation2 + $0x8] sm:$0xff]
          %v324 = vsub.f32 %v322, 84.0
          %v325 = vsub.f32 %v323, 84.0
          %v326 = vld [vmem:[#allocation6] sm:$0xff]
          %v327 = vmul.f32 %v210, %v326
          %328 = vadd.xlane.f32.xlu0 %v327
          %v329 = vpop.xlane.xlu0 %328
          %v330 = vmul.f32 %v329, 1.442695
          %v331 = vpow.pop %v330
          %v332 = vsel %vm315, %v331, 0.0
          %333 = vadd.xlane.f32.xlu0 %v332
          %v334 = vpop.xlane.xlu0 %333
          %v335 = vrot.slane %v334, 4
          %v336 = vadd.f32 %v334, %v335
          %v337 = vrot.slane %v336, 2
          %v338 = vadd.f32 %v336, %v337
          %v339 = vrot.slane %v338, 1
          %v340 = vadd.f32 %v338, %v339
          %s341 = vtos %v340
          %v342 = vstv %s341
          %v343 = vadd.f32 %v342, %v324
          %v344 = vlog2.pop %v343
          %v345 = vmul.f32 %v344, 0.6931472
          %v346 = vsub.f32 %v329, %v345
          %v347 = vsel %vm315, %v346, 0.0
          %348 = vadd.xlane.f32.xlu0 %v347
          %v349 = vpop.xlane.xlu0 %348
          %v350 = vrot.slane %v349, 4
          %v351 = vadd.f32 %v349, %v350
          %v352 = vrot.slane %v351, 2
          %v353 = vadd.f32 %v351, %v352
          %v354 = vrot.slane %v353, 1
          %v355 = vadd.f32 %v353, %v354
          %s356 = vtos %v355
          %s357 = sadd.f32 %s356, 0.0
          %v358 = vmul.f32 %v211, %v326
          %359 = vadd.xlane.f32.xlu0 %v358
          %v360 = vpop.xlane.xlu0 %359
          %v361 = vmul.f32 %v360, 1.442695
          %v362 = vpow.pop %v361
          %v363 = vsel %vm315, %v362, 0.0
          %364 = vadd.xlane.f32.xlu0 %v363
          %v365 = vpop.xlane.xlu0 %364
          %v366 = vrot.slane %v365, 4
          %v367 = vadd.f32 %v365, %v366
          %v368 = vrot.slane %v367, 2
          %v369 = vadd.f32 %v367, %v368
          %v370 = vrot.slane %v369, 1
          %v371 = vadd.f32 %v369, %v370
          %s372 = vtos %v371
          %v373 = vstv %s372
          %v374 = vadd.f32 %v373, %v325
          %v375 = vlog2.pop %v374
          %v376 = vmul.f32 %v375, 0.6931472
          %v377 = vsub.f32 %v360, %v376
          %v378 = vsel %vm315, %v377, 0.0
          %379 = vadd.xlane.f32.xlu0 %v378
          %v380 = vpop.xlane.xlu0 %379
          %v381 = vrot.slane %v380, 4
          %v382 = vadd.f32 %v380, %v381
          %v383 = vrot.slane %v382, 2
          %v384 = vadd.f32 %v382, %v383
          %v385 = vrot.slane %v384, 1
          %v386 = vadd.f32 %v384, %v385
          %s387 = vtos %v386
          %s388 = sadd.f32 %s357, %s387
          %s389 = ssub.f32 0.0, %s388
          %v390 = vrcp.pop 8.0
          %s391 = vtos %v390
          %s392 = smul.f32 %s389, %s391
          %v393 = vstv %s392
          %vm394 = vcmask 0
          %395 = vst.msk [vmem:[#allocation9] sm:$0x1] %vm394, %v393
        $region52: #{tpu_custom_call.1} parent=31 // pred_fallthru
          _
        // Predicated region
        $region53: #{tpu_custom_call.1} parent=31 // pred_check
          %p396 = pneg %p98
        $region54: #{tpu_custom_call.1} parent=31 // pred_check_branch
          %398 = sbr.rel (%p396) target = $region56
        $region55: #{tpu_custom_call.1} parent=31 // pred_region
          %s400 = ssub.s32 16, 16
          %401 = vsyncadd [#allocation5], %s400
          %s403 = sshll.u32 [#allocation9], 4
          %s404 = int_to_ptr.vmem [resolvable:$true] %s403
          %406 = dma.vmem_to_hbm [thread:$0]  %s404, 16, %s3, [#allocation5]
        $region56: #{tpu_custom_call.1} parent=31 // pred_fallthru
          _
        // Predicated region
        $region57: #{tpu_custom_call.1} parent=31 // pred_check
          %p407 = pneg %p98
        $region58: #{tpu_custom_call.1} parent=31 // pred_check_branch
          %409 = sbr.rel (%p407) target = $region60
        $region59: #{tpu_custom_call.1} parent=31 // pred_region
          %410 = dma.done [#allocation5], 16
        $region60: #{tpu_custom_call.1} parent=31 // pred_fallthru
          _
      $region32: #{tpu_custom_call.1} parent=5 // pred_fallthru
        _
      %p411 = scmp.le.s32.totalorder 2, %s12
      // Predicated region
      $region61: #{tpu_custom_call.1} parent=5 // pred_check
        %p412 = pneg %p411
      $region62: #{tpu_custom_call.1} parent=5 // pred_check_branch
        %414 = sbr.rel (%p412) target = $region64
      $region63: #{tpu_custom_call.1} parent=5 // pred_region
        %s415 = ssub.s32 %s12, 2
      $region64: #{tpu_custom_call.1} parent=5 // pred_fallthru
        _
    $region6: #{tpu_custom_call.1} parent=1 // loop_footer
      %s16 = sadd.s32 1, %s12
    $region7: #{tpu_custom_call.1} parent=1 // loop_footer_branch
      %11 = sbr.rel target = $region3
    $region8: #{tpu_custom_call.1} parent=1 // loop_exit
      _
    %416 = vsyncpa [#allocation4], 1
    %s417 = scalar_lea.sflag [#allocation4], 1
    %418 = vsyncpa %s417, 1
    %419 = vsyncpa [#allocation7], 1
    %420 = vsyncpa [#allocation5], 1
    %s421 = scalar_lea.sflag [#allocation5], 1
    %422 = vsyncpa %s421, 1

</llo_original>
